<compile_context>
chip_gen: v5e
topology: v5e:2x2
jax: 0.10.0
libtpu: 0.0.40
codegen_flags: <defaults>
</compile_context>

<pallas_src>
import math

import jax
import jax.numpy as jnp
from jax.experimental import pallas as pl
from jax.experimental.pallas import tpu as pltpu


def _round_up(x: int, m: int) -> int:
    return (x + m - 1) // m * m


def _vmem_capacity_bytes() -> int:
    """Generation-aware VMEM capacity; conservative (v7x) fallback."""
    try:
        return int(pltpu.get_tpu_info().vmem_capacity_bytes)
    except Exception:
        return 64 << 20  # v7x has the smallest VMEM (64 MiB)


def _estimate_vmem_bytes(tm, tn, ks, out_bytes, num_inputs) -> int:
    total = 2 * tm * tn * out_bytes      # double-buffered output tile
    total += num_inputs * tm * tn * 4    # per-matmul f32 intermediates (pre-product)
    for k in ks:
        total += 2 * tm * k * 2          # double-buffered bf16 x tile
        total += 2 * k * tn * 2          # double-buffered bf16 w tile
    return total


def _make_random_layer_kernel(num_inputs: int, output_dim: int):
    """Kernel taking (x0, w0, x1, w1, ..., out) refs for one batch tile."""
    scale = 1.0 / (float(output_dim) ** (1.0 / float(num_inputs)))

    def kernel(*refs):
        in_refs = refs[: 2 * num_inputs]
        o_ref = refs[2 * num_inputs]
        # bf16 operands -> MXU; accumulate in f32.
        acc = (
            jnp.dot(
                in_refs[0][...],
                in_refs[1][...],
                preferred_element_type=jnp.float32,
            )
            * scale
        )
        for i in range(1, num_inputs):
            acc = acc * jnp.dot(
                in_refs[2 * i][...],
                in_refs[2 * i + 1][...],
                preferred_element_type=jnp.float32,
            )
        # Epilogue stays f32 (v5e has no bf16 VPU); cast only at the store.
        o_ref[...] = acc.astype(o_ref.dtype)

    return kernel


def prepare_random_matrices(random_matrices):
    """One-time parameter prep: cache bf16 weights so the per-forward cast vanishes."""
    return [w.astype(jnp.bfloat16) for w in random_matrices]


def random_layer_forward(input_list, random_matrices, output_dim: int,
                         out_dtype=jnp.float32):
    """Pallas implementation of RandomLayer.forward.

    input_list[i]       : [batch, input_dim_i]
    random_matrices[i]  : [input_dim_i, output_dim]  (ideally pre-cast to bf16)
    returns             : [batch, output_dim] of out_dtype (f32 default)
    """
    num_inputs = len(input_list)
    assert num_inputs == len(random_matrices)
    batch = input_list[0].shape[0]
    ks = [x.shape[1] for x in input_list]

    # bf16 operands for the MXU. Weights should already be bf16 via
    # prepare_random_matrices (astype is then a no-op); x cast is per-call.
    xs = [x.astype(jnp.bfloat16) for x in input_list]
    ws = [w.astype(jnp.bfloat16) for w in random_matrices]

    out_bytes = jnp.dtype(out_dtype).itemsize
    vmem_cap = _vmem_capacity_bytes()
    vmem_budget = vmem_cap // 2  # headroom for compiler scratch / pipelining

    # ---- tiling ---------------------------------------------------------
    # Store-bound op: keep the output tile as wide as output_dim (weights are
    # DMA'd exactly once, stores are lane-dense) and tile only over the batch.
    tn = output_dim  # full extent; legal even if output_dim % 128 != 0
    if batch <= 32:
        tm = _round_up(max(batch, 16), 16)       # bf16 sublane packing = 16 rows
    else:
        # Aim for >= 2 batch tiles so the "parallel" axis can be sharded across
        # v7x's two TensorCores; tm multiple of 16, capped at 512 rows.
        tm = min(_round_up((batch + 1) // 2, 16), 512)
    # Shrink tm if the tile set would not fit comfortably in VMEM (only bites
    # on v7x's 64 MiB for very large output_dim; v5e/v6e have 128 MiB).
    while tm > 16 and _estimate_vmem_bytes(tm, tn, ks, out_bytes, num_inputs) > vmem_budget:
        tm = max(16, _round_up(tm // 2, 16))

    padded_batch = _round_up(batch, tm)
    if padded_batch != batch:
        xs = [jnp.pad(x, ((0, padded_batch - batch), (0, 0))) for x in xs]
    nbm = padded_batch // tm

    # ---- specs -----------------------------------------------------------
    args, in_specs = [], []
    for x, w in zip(xs, ws):
        k = x.shape[1]
        args.append(x)
        in_specs.append(pl.BlockSpec((tm, k), lambda i: (i, 0)))
        args.append(w)
        # Constant block index across the batch sweep -> weight tile DMA'd once
        # and kept VMEM-resident for all batch tiles.
        in_specs.append(pl.BlockSpec((k, tn), lambda i: (0, 0)))
    out_spec = pl.BlockSpec((tm, tn), lambda i: (i, 0))

    est = _estimate_vmem_bytes(tm, tn, ks, out_bytes, num_inputs)
    vmem_limit = int(min(max(2 * est, 16 << 20), (vmem_cap * 3) // 4))

    kernel = _make_random_layer_kernel(num_inputs, output_dim)

    out = pl.pallas_call(
        kernel,
        out_shape=jax.ShapeDtypeStruct((padded_batch, output_dim), out_dtype),
        grid_spec=pltpu.PrefetchScalarGridSpec(
            num_scalar_prefetch=0,
            grid=(nbm,),
            in_specs=in_specs,
            out_specs=out_spec,
        ),
        compiler_params=pltpu.CompilerParams(
            dimension_semantics=("parallel",),
            vmem_limit_bytes=vmem_limit,
        ),
    )(*args)

    if padded_batch != batch:
        out = out[:batch]
    return out


# ---------------------------- references ----------------------------------


def _reference_f32(input_list, random_matrices, output_dim):
    """Pure-JAX f32 reference mirroring the PyTorch forward."""
    return_list = [x @ w for x, w in zip(input_list, random_matrices)]
    out = return_list[0] / math.pow(float(output_dim), 1.0 / len(return_list))
    for single in return_list[1:]:
        out = out * single
    return out


def _reference_bf16(input_list, random_matrices, output_dim):
    """Reference with the same bf16-operand / f32-accumulate numerics as the kernel."""
    return_list = [
        jnp.dot(
            x.astype(jnp.bfloat16),
            w.astype(jnp.bfloat16),
            preferred_element_type=jnp.float32,
        )
        for x, w in zip(input_list, random_matrices)
    ]
    out = return_list[0] / math.pow(float(output_dim), 1.0 / len(return_list))
    for single in return_list[1:]:
        out = out * single
    return out


if __name__ == "__main__":
    key = jax.random.PRNGKey(0)

    # Module config: two input feature streams (the common DANN/CDAN use case).
    input_dim_list = [32, 16]
    output_dim = 256
    batch = 8

    keys = jax.random.split(key, 2 * len(input_dim_list))

    # Deterministic "random_matrix" parameters (torch.randn equivalent).
    random_matrices = [
        jax.random.normal(keys[i], (input_dim_list[i], output_dim), jnp.float32)
        for i in range(len(input_dim_list))
    ]
    # One-time bf16 weight cache (parameter setup, not per-forward).
    random_matrices_bf16 = prepare_random_matrices(random_matrices)

    # Example inputs.
    input_list = [
        jax.random.normal(
            keys[len(input_dim_list) + i], (batch, input_dim_list[i]), jnp.float32
        )
        for i in range(len(input_dim_list))
    ]

    out = random_layer_forward(input_list, random_matrices_bf16, output_dim)
    out = jax.block_until_ready(out)
    assert out.shape == (batch, output_dim)
    assert out.dtype == jnp.float32

    # Tight check against a reference with identical bf16-operand numerics.
    ref_bf16 = _reference_bf16(input_list, random_matrices, output_dim)
    assert jnp.allclose(out, ref_bf16, atol=1e-3, rtol=1e-3), "mismatch vs bf16 reference"

    # Loose check against the exact f32 PyTorch-equivalent reference
    # (bf16 MXU operands cost ~1% relative error, irrelevant for random projections).
    ref_f32 = _reference_f32(input_list, random_matrices, output_dim)
    assert jnp.allclose(out, ref_f32, atol=5e-1, rtol=5e-2), "mismatch vs f32 reference"

    print("KERNEL_OK")
</pallas_src>

<mosaic_0001>
module attributes {stable_mosaic.version = 11 : i64} {
  func.func @kernel(%arg0: i32, %arg1: memref<16x32xbf16, #tpu.memory_space<vmem>>, %arg2: memref<32x256xbf16, #tpu.memory_space<vmem>>, %arg3: memref<16x16xbf16, #tpu.memory_space<vmem>>, %arg4: memref<16x256xbf16, #tpu.memory_space<vmem>>, %arg5: memref<16x256xf32, #tpu.memory_space<vmem>>) attributes {dimension_semantics = [#tpu.dimension_semantics<parallel>], iteration_bounds = array<i64: 1>, scalar_prefetch = 0 : i64, scratch_operands = 0 : i64, tpu.core_type = #tpu.core_type<tc>, window_params = [{transform_indices = @transform_0, window_bounds = array<i64: 16, 32>}, {pipeline_mode = #tpu.pipeline_mode<synchronous>, transform_indices = @transform_1, window_bounds = array<i64: 32, 256>}, {transform_indices = @transform_2, window_bounds = array<i64: 16, 16>}, {pipeline_mode = #tpu.pipeline_mode<synchronous>, transform_indices = @transform_3, window_bounds = array<i64: 16, 256>}, {transform_indices = @transform_4, window_bounds = array<i64: 16, 256>}]} {
    %c0 = arith.constant 0 : index
    %c0_0 = arith.constant 0 : index
    %0 = vector.load %arg1[%c0, %c0_0] : memref<16x32xbf16, #tpu.memory_space<vmem>>, vector<16x32xbf16>
    %c0_1 = arith.constant 0 : index
    %c0_2 = arith.constant 0 : index
    %1 = vector.load %arg2[%c0_1, %c0_2] : memref<32x256xbf16, #tpu.memory_space<vmem>>, vector<32x256xbf16>
    %cst = arith.constant dense<0.000000e+00> : vector<16x256xf32>
    %2 = tpu.matmul %0, %1, %cst {dimension_numbers = #tpu.dot_dimension_numbers<[1], [0], [0], [1], [0, 0, 1, 1], [], []>} : vector<16x32xbf16>, vector<32x256xbf16>, vector<16x256xf32> -> vector<16x256xf32>
    %cst_3 = arith.constant 6.250000e-02 : f32
    %3 = vector.broadcast %cst_3 : f32 to vector<16x256xf32>
    %4 = arith.mulf %2, %3 : vector<16x256xf32>
    %c0_4 = arith.constant 0 : index
    %c0_5 = arith.constant 0 : index
    %5 = vector.load %arg3[%c0_4, %c0_5] : memref<16x16xbf16, #tpu.memory_space<vmem>>, vector<16x16xbf16>
    %c0_6 = arith.constant 0 : index
    %c0_7 = arith.constant 0 : index
    %6 = vector.load %arg4[%c0_6, %c0_7] : memref<16x256xbf16, #tpu.memory_space<vmem>>, vector<16x256xbf16>
    %cst_8 = arith.constant dense<0.000000e+00> : vector<16x256xf32>
    %7 = tpu.matmul %5, %6, %cst_8 {dimension_numbers = #tpu.dot_dimension_numbers<[1], [0], [0], [1], [0, 0, 1, 1], [], []>} : vector<16x16xbf16>, vector<16x256xbf16>, vector<16x256xf32> -> vector<16x256xf32>
    %8 = arith.mulf %4, %7 : vector<16x256xf32>
    %c0_9 = arith.constant 0 : index
    %c0_10 = arith.constant 0 : index
    %9 = vector.load %arg5[%c0_9, %c0_10] : memref<16x256xf32, #tpu.memory_space<vmem>>, vector<16x256xf32>
    tpu.vector_store %arg5[%c0_9, %c0_10], %8 {strides = array<i32>} : memref<16x256xf32, #tpu.memory_space<vmem>>, vector<16x256xf32>,
    return
  }
  func.func @transform_0(%arg0: i32) -> (i32, i32) {
    %c0_i32 = arith.constant 0 : i32
    %c0_i32_0 = arith.constant 0 : i32
    return %arg0, %c0_i32 : i32, i32
  }
  func.func @transform_1(%arg0: i32) -> (i32, i32) {
    %c0_i32 = arith.constant 0 : i32
    %c0_i32_0 = arith.constant 0 : i32
    %c0_i32_1 = arith.constant 0 : i32
    return %c0_i32, %c0_i32_0 : i32, i32
  }
  func.func @transform_2(%arg0: i32) -> (i32, i32) {
    %c0_i32 = arith.constant 0 : i32
    %c0_i32_0 = arith.constant 0 : i32
    return %arg0, %c0_i32 : i32, i32
  }
  func.func @transform_3(%arg0: i32) -> (i32, i32) {
    %c0_i32 = arith.constant 0 : i32
    %c0_i32_0 = arith.constant 0 : i32
    %c0_i32_1 = arith.constant 0 : i32
    return %c0_i32, %c0_i32_0 : i32, i32
  }
  func.func @transform_4(%arg0: i32) -> (i32, i32) {
    %c0_i32 = arith.constant 0 : i32
    %c0_i32_0 = arith.constant 0 : i32
    return %arg0, %c0_i32 : i32, i32
  }
}

</mosaic_0001>

<llo_original>
// kernel: tpu_custom_call.1
$region0: #{tpu_custom_call.1}
  #allocation0 [shape = 'u32[]', space=smem, size = 0x4, offset = 0x4, fixed_abs, tag = 'smem constant byte address 0x4 - core index']
  #allocation1 [shape = 'u32[72,128]{1,0:T(1,128)}', space=vmem, size = 0x9000, scoped, tag = 'internal scratch']
  %s0 = inlined_call_operand.hbm [shape: bf16[16,32], index: 0, kind: input, shape index: {}]
  %s1 = inlined_call_operand.hbm [shape: bf16[32,256], index: 1, kind: input, shape index: {}]
  %s2 = inlined_call_operand.hbm [shape: bf16[16,16], index: 2, kind: input, shape index: {}]
  %s3 = inlined_call_operand.hbm [shape: bf16[16,256], index: 3, kind: input, shape index: {}]
  %s4 = inlined_call_operand.hbm [shape: f32[16,256], index: 4, kind: output, shape index: {}]
  %s5 = sld [smem:[#allocation0]]
  $region42: #{tpu_custom_call.1} parent=0
    _
  %s7 = ssub.s32 1, %s5
  %s8 = scalar_select 0, %s7, %s5
  $region1: #{tpu_custom_call.1} parent=0
    #allocation2 [shape = 'u8[4096]{0}', space=vmem, size = 0x1000, scoped, tag = 'input window, operand 0, single buffered']
    #allocation3 [shape = 's32[1]{0}', space=sflag, size = 0x4, scoped, tag = 'scoped memory for tpu_custom_call.1']
    #allocation4 [shape = 's32[1]{0}', space=sflag, size = 0x4, scoped, tag = 'scoped memory for tpu_custom_call.1']
    #allocation5 [shape = 'u8[16384]{0}', space=vmem, size = 0x4000, scoped, tag = 'input window, operand 1, single buffered']
    #allocation6 [shape = 's32[1]{0}', space=sflag, size = 0x4, scoped, tag = 'scoped memory for tpu_custom_call.1']
    #allocation7 [shape = 'u8[4096]{0}', space=vmem, size = 0x1000, scoped, tag = 'input window, operand 2, single buffered']
    #allocation8 [shape = 'u8[8192]{0}', space=vmem, size = 0x2000, scoped, tag = 'input window, operand 3, single buffered']
    #allocation9 [shape = 's32[1]{0}', space=sflag, size = 0x4, scoped, tag = 'scoped memory for tpu_custom_call.1']
    #allocation10 [shape = 'u8[16384]{0}', space=vmem, size = 0x4000, scoped, tag = 'output window, operand 0, single buffered']
    %9 = vsyncpa [#allocation3], 0
    %10 = vsyncpa [#allocation6], 0
    %11 = vsyncpa [#allocation9], 0
    %12 = vsyncpa [#allocation4], 0
    // Predicated region
    $region2: #{tpu_custom_call.1} parent=1 // pred_check
      _
    $region3: #{tpu_custom_call.1} parent=1 // pred_check_branch
      %14 = sbr.rel (0) target = $region5
    $region4: #{tpu_custom_call.1} parent=1 // pred_region
      %16 = vsyncadd [#allocation3], 0
      %s17 = sshll.u32 %s0, 4
      %s18 = int_to_ptr.hbm [resolvable:$true] %s17
      %s19 = sshll.u32 [#allocation2], 4
      %s20 = int_to_ptr.vmem [resolvable:$true] %s19
      %25 = dma.hbm_to_vmem [thread:$0]  %s18, 128, %s20, [#allocation3], 64, 64, 4
    $region5: #{tpu_custom_call.1} parent=1 // pred_fallthru
      _
    // Predicated region
    $region6: #{tpu_custom_call.1} parent=1 // pred_check
      _
    $region7: #{tpu_custom_call.1} parent=1 // pred_check_branch
      %27 = sbr.rel (0) target = $region9
    $region8: #{tpu_custom_call.1} parent=1 // pred_region
      %29 = vsyncadd [#allocation6], 0
      %s30 = sshll.u32 %s1, 4
      %s31 = int_to_ptr.hbm [resolvable:$true] %s30
      %s32 = sshll.u32 [#allocation5], 4
      %s33 = int_to_ptr.vmem [resolvable:$true] %s32
      %38 = dma.hbm_to_vmem [thread:$0]  %s31, 512, %s33, [#allocation6], 128, 128, 8
    $region9: #{tpu_custom_call.1} parent=1 // pred_fallthru
      _
    // Predicated region
    $region10: #{tpu_custom_call.1} parent=1 // pred_check
      _
    $region11: #{tpu_custom_call.1} parent=1 // pred_check_branch
      %40 = sbr.rel (0) target = $region13
    $region12: #{tpu_custom_call.1} parent=1 // pred_region
      %42 = vsyncadd [#allocation6], 0
      %s43 = sshll.u32 %s2, 4
      %s44 = int_to_ptr.hbm [resolvable:$true] %s43
      %s45 = sshll.u32 [#allocation7], 4
      %s46 = int_to_ptr.vmem [resolvable:$true] %s45
      %51 = dma.hbm_to_vmem [thread:$0]  %s44, 128, %s46, [#allocation6], 64, 64, 4
    $region13: #{tpu_custom_call.1} parent=1 // pred_fallthru
      _
    // Predicated region
    $region14: #{tpu_custom_call.1} parent=1 // pred_check
      _
    $region15: #{tpu_custom_call.1} parent=1 // pred_check_branch
      %53 = sbr.rel (0) target = $region17
    $region16: #{tpu_custom_call.1} parent=1 // pred_region
      %55 = vsyncadd [#allocation9], 0
      %s56 = sshll.u32 %s3, 4
      %s57 = int_to_ptr.hbm [resolvable:$true] %s56
      %s58 = sshll.u32 [#allocation8], 4
      %s59 = int_to_ptr.vmem [resolvable:$true] %s58
      %64 = dma.hbm_to_vmem [thread:$0]  %s57, 256, %s59, [#allocation9], 128, 128, 8
    $region17: #{tpu_custom_call.1} parent=1 // pred_fallthru
      _
    // Predicated region
    $region18: #{tpu_custom_call.1} parent=1 // pred_check
      _
    $region19: #{tpu_custom_call.1} parent=1 // pred_check_branch
      %66 = sbr.rel (0) target = $region21
    $region20: #{tpu_custom_call.1} parent=1 // pred_region
      %68 = dma.done [#allocation3], 128
    $region21: #{tpu_custom_call.1} parent=1 // pred_fallthru
      _
    // Predicated region
    $region22: #{tpu_custom_call.1} parent=1 // pred_check
      _
    $region23: #{tpu_custom_call.1} parent=1 // pred_check_branch
      %70 = sbr.rel (0) target = $region25
    $region24: #{tpu_custom_call.1} parent=1 // pred_region
      %72 = dma.done [#allocation6], 512
    $region25: #{tpu_custom_call.1} parent=1 // pred_fallthru
      _
    // Predicated region
    $region26: #{tpu_custom_call.1} parent=1 // pred_check
      _
    $region27: #{tpu_custom_call.1} parent=1 // pred_check_branch
      %74 = sbr.rel (0) target = $region29
    $region28: #{tpu_custom_call.1} parent=1 // pred_region
      %76 = dma.done [#allocation6], 128
    $region29: #{tpu_custom_call.1} parent=1 // pred_fallthru
      _
    // Predicated region
    $region30: #{tpu_custom_call.1} parent=1 // pred_check
      _
    $region31: #{tpu_custom_call.1} parent=1 // pred_check_branch
      %78 = sbr.rel (0) target = $region33
    $region32: #{tpu_custom_call.1} parent=1 // pred_region
      %80 = dma.done [#allocation9], 256
    $region33: #{tpu_custom_call.1} parent=1 // pred_fallthru
      _
    %v82 = vld [vmem:[#allocation2] sm:$0xf]
    %v83 = vld [vmem:[#allocation2 + $0x4] sm:$0xf]
    %v84 = vld [vmem:[#allocation5] sm:$0xff]
    %v85 = vld [vmem:[#allocation5 + $0x8] sm:$0xff]
    %v86 = vld [vmem:[#allocation5 + $0x10] sm:$0xff]
    %v87 = vld [vmem:[#allocation5 + $0x18] sm:$0xff]
    %v90 = vunpack.c.l.b16 %v82
    %v91 = vunpack.c.l.b16 %v83
    %v92 = vpack.c.b16 %v91, %v90
    %v97 = vunpack.c.l.b16 %v84
    %v98 = vunpack.c.h.b16 %v84
    %v99 = vunpack.c.l.b16 %v85
    %v100 = vunpack.c.h.b16 %v85
    %v101 = vunpack.c.l.b16 %v86
    %v102 = vunpack.c.h.b16 %v86
    %v103 = vunpack.c.l.b16 %v87
    %v104 = vunpack.c.h.b16 %v87
    %v105 = vpack.c.b16 %v99, %v97
    %v106 = vpack.c.b16 %v100, %v98
    %v107 = vpack.c.b16 %v103, %v101
    %v108 = vpack.c.b16 %v104, %v102
    %vm113 = vcmask 261120
    %v115 = vsel %vm113, %v92, 0
    %117 = vmatpush.bf16.msra.mxu0 0
    %118 = vmatpush.bf16.msra.mxu0 0
    %119 = vmatpush.bf16.msra.mxu0 0
    %120 = vmatpush.bf16.msra.mxu0 0
    %121 = vmatpush.bf16.msra.mxu0 0
    %122 = vmatpush.bf16.msra.mxu0 0
    %123 = vmatpush.bf16.msra.mxu0 %v107
    %124 = vmatpush.bf16.msra.mxu0 %v105
    %125 = vmatmul.bf16.gmra.mxu0 %v115
    %v126 = vpop.f32.mrf.mxu0
    %v127 = vadd.f32 0.0, %v126
    %v128 = vpop.f32.mrf.mxu0
    %v129 = vadd.f32 0.0, %v128
    %130 = vdwg.mxu0
    %131 = vmatpush.bf16.msra.mxu0 0
    %132 = vmatpush.bf16.msra.mxu0 0
    %133 = vmatpush.bf16.msra.mxu0 0
    %134 = vmatpush.bf16.msra.mxu0 0
    %135 = vmatpush.bf16.msra.mxu0 0
    %136 = vmatpush.bf16.msra.mxu0 0
    %137 = vmatpush.bf16.msra.mxu0 %v108
    %138 = vmatpush.bf16.msra.mxu0 %v106
    %139 = vmatmul.bf16.gmra.mxu0 %v115
    %v140 = vpop.f32.mrf.mxu0
    %v141 = vadd.f32 0.0, %v140
    %v142 = vpop.f32.mrf.mxu0
    %v143 = vadd.f32 0.0, %v142
    %144 = vdwg.mxu0
    %v145 = vmul.f32 %v127, 0.0625
    %v146 = vmul.f32 %v141, 0.0625
    %v147 = vmul.f32 %v129, 0.0625
    %v148 = vmul.f32 %v143, 0.0625
    %v149 = vld [vmem:[#allocation7] sm:$0xf]
    %v150 = vld [vmem:[#allocation7 + $0x4] sm:$0xf]
    %v151 = vld [vmem:[#allocation8] sm:$0xff]
    %v152 = vld [vmem:[#allocation8 + $0x8] sm:$0xff]
    %v155 = vunpack.c.l.b16 %v149
    %v156 = vunpack.c.l.b16 %v150
    %v157 = vpack.c.b16 %v156, %v155
    %v160 = vunpack.c.l.b16 %v151
    %v161 = vunpack.c.h.b16 %v151
    %v162 = vunpack.c.l.b16 %v152
    %v163 = vunpack.c.h.b16 %v152
    %v164 = vpack.c.b16 %v162, %v160
    %v165 = vpack.c.b16 %v163, %v161
    %vm168 = vcmask 130048
    %v170 = vsel %vm168, %v157, 0
    %172 = vmatpush.bf16.msra.mxu0 0
    %173 = vmatpush.bf16.msra.mxu0 0
    %174 = vmatpush.bf16.msra.mxu0 0
    %175 = vmatpush.bf16.msra.mxu0 0
    %176 = vmatpush.bf16.msra.mxu0 0
    %177 = vmatpush.bf16.msra.mxu0 0
    %178 = vmatpush.bf16.msra.mxu0 0
    %179 = vmatpush.bf16.msra.mxu0 %v164
    %180 = vmatmul.bf16.gmra.mxu0 %v170
    %v181 = vpop.f32.mrf.mxu0
    %v182 = vadd.f32 0.0, %v181
    %v183 = vpop.f32.mrf.mxu0
    %v184 = vadd.f32 0.0, %v183
    %185 = vdwg.mxu0
    %186 = vmatpush.bf16.msra.mxu0 0
    %187 = vmatpush.bf16.msra.mxu0 0
    %188 = vmatpush.bf16.msra.mxu0 0
    %189 = vmatpush.bf16.msra.mxu0 0
    %190 = vmatpush.bf16.msra.mxu0 0
    %191 = vmatpush.bf16.msra.mxu0 0
    %192 = vmatpush.bf16.msra.mxu0 0
    %193 = vmatpush.bf16.msra.mxu0 %v165
    %194 = vmatmul.bf16.gmra.mxu0 %v170
    %v195 = vpop.f32.mrf.mxu0
    %v196 = vadd.f32 0.0, %v195
    %v197 = vpop.f32.mrf.mxu0
    %v198 = vadd.f32 0.0, %v197
    %199 = vdwg.mxu0
    %v200 = vmul.f32 %v145, %v182
    %v201 = vmul.f32 %v146, %v196
    %v202 = vmul.f32 %v147, %v184
    %v203 = vmul.f32 %v148, %v198
    %204 = vst [vmem:[#allocation10] sm:$0xff] %v200
    %205 = vst [vmem:[#allocation10 + $0x8] sm:$0xff] %v201
    %206 = vst [vmem:[#allocation10 + $0x10] sm:$0xff] %v202
    %207 = vst [vmem:[#allocation10 + $0x18] sm:$0xff] %v203
    // Predicated region
    $region34: #{tpu_custom_call.1} parent=1 // pred_check
      _
    $region35: #{tpu_custom_call.1} parent=1 // pred_check_branch
      %209 = sbr.rel (0) target = $region37
    $region36: #{tpu_custom_call.1} parent=1 // pred_region
      %211 = vsyncadd [#allocation4], 0
      %s212 = sshll.u32 [#allocation10], 4
      %s213 = int_to_ptr.vmem [resolvable:$true] %s212
      %s214 = sshll.u32 %s4, 4
      %s215 = int_to_ptr.hbm [resolvable:$true] %s214
      %220 = dma.vmem_to_hbm [thread:$0]  %s213, 512, %s215, [#allocation4], 256, 256, 16
    $region37: #{tpu_custom_call.1} parent=1 // pred_fallthru
      _
    // Predicated region
    $region38: #{tpu_custom_call.1} parent=1 // pred_check
      _
    $region39: #{tpu_custom_call.1} parent=1 // pred_check_branch
      %222 = sbr.rel (0) target = $region41
    $region40: #{tpu_custom_call.1} parent=1 // pred_region
      %224 = dma.done [#allocation4], 512
    $region41: #{tpu_custom_call.1} parent=1 // pred_fallthru
      _
    %225 = vsyncpa [#allocation3], 1
    %226 = vsyncpa [#allocation6], 1
    %227 = vsyncpa [#allocation9], 1
    %228 = vsyncpa [#allocation4], 1

</llo_original>
